<compile_context>
chip_gen: v7x
topology: tpu7x:2x2x1
jax: 0.10.0
libtpu: 0.0.40
codegen_flags: <defaults>
</compile_context>

<pallas_src>
import jax
import jax.numpy as jnp
from jax.experimental import pallas as pl
from jax.experimental.pallas import tpu as pltpu


def _xsoftmax_kernel(x_ref, m_ref, o_ref):
    # x_ref / m_ref / o_ref: (tm, K_pad) tiles (B and H block dims squeezed).
    x = x_ref[...].astype(jnp.float32)
    keep = m_ref[...] != 0                       # any nonzero mask value = keep
    x = jnp.where(keep, x, x - 100000.0)         # masked_fill_approx(input, rmask, -100000)
    x = x - jnp.max(x, axis=-1, keepdims=True)
    e = jnp.exp(x)
    s = jnp.sum(e, axis=-1, keepdims=True)
    o_ref[...] = (e * pl.reciprocal(s, approx=True)).astype(o_ref.dtype)


def _round_up(x, m):
    return ((x + m - 1) // m) * m


def xsoftmax(input_arr, mask_arr, dim=-1, *, tm=None):
    """XSoftmax forward. `dim` must be the last axis for this kernel."""
    assert dim in (-1, input_arr.ndim - 1), "kernel implements softmax over the last axis"
    orig_shape = input_arr.shape
    K = orig_shape[-1]

    # ---- Normalize to a 4-D (B, H, Q, K) view and a dedup'd 4-D mask. ------
    if input_arr.ndim == 4 and mask_arr.ndim <= 4:
        x4 = input_arr
        m_shape = (1,) * (4 - mask_arr.ndim) + mask_arr.shape
        m4 = mask_arr.reshape(m_shape)
        for ms, xs in zip(m4.shape, x4.shape):
            assert ms == 1 or ms == xs, "mask is not broadcastable to input"
    else:
        # Generic fallback: flatten everything to rows (loses B/H mask dedup).
        x4 = input_arr.reshape((1, 1, -1, K))
        m4 = jnp.broadcast_to(mask_arr, orig_shape).reshape((1, 1, -1, K))

    B, H, Q, _ = x4.shape
    Bm, Hm = m4.shape[0], m4.shape[1]
    # Keep B/H broadcast dims at extent 1 (deduplicated mask traffic), but
    # expand Q/K so mask blocks match the input blocks. Ship as int8.
    m4 = (jnp.broadcast_to(m4, (Bm, Hm, Q, K)) != 0).astype(jnp.int8)

    in_b = x4.dtype.itemsize
    out_b = in_b
    row_align = {4: 8, 2: 16, 1: 32}.get(in_b, 8)   # sublane packing per dtype

    # ---- Pad K to a lane-dense multiple of 128. ----------------------------
    K_pad = _round_up(K, 128)

    # ---- Generation-aware row tile from VMEM capacity. ---------------------
    try:
        vmem_cap = pltpu.get_tpu_info().vmem_capacity_bytes
    except Exception:
        vmem_cap = 64 << 20                         # conservative (v7x per-TC)
    vmem_limit = min(int(vmem_cap * 0.75), 100 << 20)
    tile_budget = int(vmem_limit * 0.6)
    # Double-buffered in/out/mask blocks + ~2 live f32 temporaries in-kernel.
    per_row_bytes = K_pad * (2 * (in_b + out_b + 1) + 8)
    if tm is None:
        tm = tile_budget // per_row_bytes
        tm = max(row_align, min(tm, 1024))
    tm = max(row_align, (tm // row_align) * row_align)
    tm = min(tm, _round_up(Q, row_align))           # never exceed (padded) Q

    Q_pad = _round_up(Q, tm)

    # ---- Pad once (padded rows/cols are fully masked -> harmless). ---------
    if Q_pad != Q or K_pad != K:
        x4 = jnp.pad(x4, ((0, 0), (0, 0), (0, Q_pad - Q), (0, K_pad - K)))
        m4 = jnp.pad(m4, ((0, 0), (0, 0), (0, Q_pad - Q), (0, K_pad - K)))

    b_bcast = (Bm == 1)
    h_bcast = (Hm == 1)

    def x_map(b, h, q):
        return (b, h, q, 0)

    def m_map(b, h, q):
        return (0 if b_bcast else b, 0 if h_bcast else h, q, 0)

    grid = (B, H, Q_pad // tm)

    bytes_accessed = (x4.size * in_b) + m4.size + (x4.size * out_b)
    cost = pl.CostEstimate(
        flops=5 * x4.size,
        transcendentals=x4.size,
        bytes_accessed=bytes_accessed,
    )

    out4 = pl.pallas_call(
        _xsoftmax_kernel,
        out_shape=jax.ShapeDtypeStruct((B, H, Q_pad, K_pad), input_arr.dtype),
        grid=grid,
        in_specs=[
            pl.BlockSpec((None, None, tm, K_pad), x_map),
            pl.BlockSpec((None, None, tm, K_pad), m_map),
        ],
        out_specs=pl.BlockSpec((None, None, tm, K_pad), x_map),
        compiler_params=pltpu.CompilerParams(
            dimension_semantics=("parallel", "parallel", "parallel"),
            vmem_limit_bytes=vmem_limit,
        ),
        cost_estimate=cost,
    )(x4, m4)

    out = out4[:, :, :Q, :K]
    return out.reshape(orig_shape)


def _reference_xsoftmax(x, mask):
    mask_b = jnp.broadcast_to(mask, x.shape)
    rmask = (mask_b == 0)
    z = x + (-100000.0) * rmask.astype(x.dtype)
    z = jax.nn.softmax(z, axis=-1)
    return z + 0.0 * rmask.astype(z.dtype)


if __name__ == "__main__":
    key = jax.random.PRNGKey(0)
    k1, k2, k3, k4 = jax.random.split(key, 4)

    # Case 1: canonical DeBERTa attention shape, mask broadcast over H.
    B, H, Q, K = 2, 4, 16, 16
    x = jax.random.normal(k1, (B, H, Q, K), dtype=jnp.float32)
    mask = (jax.random.uniform(k2, (B, 1, Q, K)) > 0.3).astype(jnp.int32)

    out = xsoftmax(x, mask, dim=-1)
    out = jax.block_until_ready(out)
    ref = _reference_xsoftmax(x, mask)
    assert out.shape == x.shape
    # approx reciprocal -> slightly looser tolerance than exact softmax
    assert jnp.allclose(out, ref, atol=2e-3, rtol=5e-3), "mismatch vs reference (case 1)"

    # Case 2: ragged Q (exercises row padding) with mask broadcast over B and H.
    B2, H2, Q2, K2 = 2, 3, 10, 16
    x2 = jax.random.normal(k3, (B2, H2, Q2, K2), dtype=jnp.float32)
    mask2 = (jax.random.uniform(k4, (1, 1, Q2, K2)) > 0.3).astype(jnp.int32)

    out2 = xsoftmax(x2, mask2, dim=-1)
    out2 = jax.block_until_ready(out2)
    ref2 = _reference_xsoftmax(x2, mask2)
    assert out2.shape == x2.shape
    assert jnp.allclose(out2, ref2, atol=2e-3, rtol=5e-3), "mismatch vs reference (case 2)"

    print("KERNEL_OK")
</pallas_src>

<mosaic_0001>
module attributes {stable_mosaic.version = 11 : i64} {
  func.func @_xsoftmax_kernel(%arg0: i32, %arg1: i32, %arg2: i32, %arg3: memref<1x1x16x128xf32, #tpu.memory_space<vmem>>, %arg4: memref<1x1x16x128xi8, #tpu.memory_space<vmem>>, %arg5: memref<1x1x16x128xf32, #tpu.memory_space<vmem>>) attributes {dimension_semantics = [#tpu.dimension_semantics<parallel>, #tpu.dimension_semantics<parallel>, #tpu.dimension_semantics<parallel>], iteration_bounds = array<i64: 2, 4, 1>, scalar_prefetch = 0 : i64, scratch_operands = 0 : i64, tpu.core_type = #tpu.core_type<tc>, window_params = [{transform_indices = @transform_0, window_bounds = array<i64: 1, 1, 16, 128>}, {transform_indices = @transform_1, window_bounds = array<i64: 1, 1, 16, 128>}, {transform_indices = @transform_2, window_bounds = array<i64: 1, 1, 16, 128>}]} {
    %c0 = arith.constant 0 : index
    %c0_0 = arith.constant 0 : index
    %c0_1 = arith.constant 0 : index
    %c0_2 = arith.constant 0 : index
    %0 = vector.load %arg3[%c0, %c0_0, %c0_1, %c0_2] : memref<1x1x16x128xf32, #tpu.memory_space<vmem>>, vector<1x1x16x128xf32>
    %1 = vector.shape_cast %0 : vector<1x1x16x128xf32> to vector<16x128xf32>
    %c0_3 = arith.constant 0 : index
    %c0_4 = arith.constant 0 : index
    %c0_5 = arith.constant 0 : index
    %c0_6 = arith.constant 0 : index
    %2 = vector.load %arg4[%c0_3, %c0_4, %c0_5, %c0_6] : memref<1x1x16x128xi8, #tpu.memory_space<vmem>>, vector<1x1x16x128xi8>
    %3 = vector.shape_cast %2 : vector<1x1x16x128xi8> to vector<16x128xi8>
    %c0_i8 = arith.constant 0 : i8
    %4 = vector.broadcast %c0_i8 : i8 to vector<16x128xi8>
    %5 = arith.cmpi ne, %3, %4 : vector<16x128xi8>
    %cst = arith.constant 1.000000e+05 : f32
    %6 = vector.broadcast %cst : f32 to vector<16x128xf32>
    %7 = arith.subf %1, %6 : vector<16x128xf32>
    %8 = arith.select %5, %1, %7 : vector<16x128xi1>, vector<16x128xf32>
    %cst_7 = arith.constant dense<0xFF800000> : vector<16xf32>
    %9 = vector.multi_reduction <maximumf>, %8, %cst_7 [1] : vector<16x128xf32> to vector<16xf32>
    %10 = vector.shape_cast %9 : vector<16xf32> to vector<16x1xf32>
    %11 = vector.broadcast %10 : vector<16x1xf32> to vector<16x128xf32>
    %12 = arith.subf %8, %11 : vector<16x128xf32>
    %13 = math.exp %12 : vector<16x128xf32>
    %cst_8 = arith.constant dense<0.000000e+00> : vector<16xf32>
    %14 = vector.multi_reduction <add>, %13, %cst_8 [1] : vector<16x128xf32> to vector<16xf32>
    %15 = vector.shape_cast %14 : vector<16xf32> to vector<16x1xf32>
    %16 = tpu.reciprocal %15 {approx = true} : vector<16x1xf32> -> vector<16x1xf32>
    %17 = vector.broadcast %16 : vector<16x1xf32> to vector<16x128xf32>
    %18 = arith.mulf %13, %17 : vector<16x128xf32>
    %c0_9 = arith.constant 0 : index
    %c0_10 = arith.constant 0 : index
    %c0_11 = arith.constant 0 : index
    %c0_12 = arith.constant 0 : index
    %19 = vector.load %arg5[%c0_9, %c0_10, %c0_11, %c0_12] : memref<1x1x16x128xf32, #tpu.memory_space<vmem>>, vector<1x1x16x128xf32>
    %20 = vector.shape_cast %19 : vector<1x1x16x128xf32> to vector<16x128xf32>
    %21 = vector.shape_cast %18 : vector<16x128xf32> to vector<1x1x16x128xf32>
    tpu.vector_store %arg5[%c0_9, %c0_10, %c0_11, %c0_12], %21 {strides = array<i32>} : memref<1x1x16x128xf32, #tpu.memory_space<vmem>>, vector<1x1x16x128xf32>,
    return
  }
  func.func @transform_0(%arg0: i32, %arg1: i32, %arg2: i32) -> (i32, i32, i32, i32) {
    %c0_i32 = arith.constant 0 : i32
    %c0_i32_0 = arith.constant 0 : i32
    return %arg0, %arg1, %arg2, %c0_i32 : i32, i32, i32, i32
  }
  func.func @transform_1(%arg0: i32, %arg1: i32, %arg2: i32) -> (i32, i32, i32, i32) {
    %c0_i32 = arith.constant 0 : i32
    %c0_i32_0 = arith.constant 0 : i32
    %c0_i32_1 = arith.constant 0 : i32
    return %arg0, %c0_i32, %arg2, %c0_i32_0 : i32, i32, i32, i32
  }
  func.func @transform_2(%arg0: i32, %arg1: i32, %arg2: i32) -> (i32, i32, i32, i32) {
    %c0_i32 = arith.constant 0 : i32
    %c0_i32_0 = arith.constant 0 : i32
    return %arg0, %arg1, %arg2, %c0_i32 : i32, i32, i32, i32
  }
}

</mosaic_0001>

<llo_original>
// kernel: tpu_custom_call.1
$region0: #{tpu_custom_call.1}
  #allocation0 [shape = 'u32[]', space=smem, size = 0x4, offset = 0x4, fixed_abs, tag = 'smem constant byte address 0x4 - core index']
  #allocation1 [shape = 'u32[144,128]{1,0:T(1,128)}', space=vmem, size = 0x12000, scoped, tag = 'internal scratch']
  %s0 = inlined_call_operand.hbm [shape: f32[2,4,16,128], index: 0, kind: input, shape index: {}]
  %s1 = inlined_call_operand.hbm [shape: s8[2,1,16,128], index: 1, kind: input, shape index: {}]
  %s2 = inlined_call_operand.hbm [shape: f32[2,4,16,128], index: 2, kind: output, shape index: {}]
  %s3 = sld [smem:[#allocation0]]
  $region49: #{tpu_custom_call.1} parent=0
    _
  %s5 = ssub.s32 1, %s3
  %s6 = scalar_select 0, %s5, %s3
  $region1: #{tpu_custom_call.1} parent=0
    #allocation2 [shape = 'u8[16384]{0}', space=vmem, size = 0x4000, scoped, tag = 'input window, operand 0']
    #allocation3 [shape = 's32[2]{0}', space=sflag, size = 0x8, scoped, tag = 'scoped memory for tpu_custom_call.1']
    #allocation4 [shape = 's32[2]{0}', space=sflag, size = 0x8, scoped, tag = 'scoped memory for tpu_custom_call.1']
    #allocation5 [shape = 'u8[4096]{0}', space=vmem, size = 0x1000, scoped, tag = 'input window, operand 1']
    #allocation6 [shape = 's32[2]{0}', space=sflag, size = 0x8, scoped, tag = 'scoped memory for tpu_custom_call.1']
    #allocation7 [shape = 'u8[16384]{0}', space=vmem, size = 0x4000, scoped, tag = 'output window, operand 0']
    %7 = vsyncpa [#allocation3], 0
    %s8 = scalar_lea.sflag [#allocation3], 1
    %9 = vsyncpa %s8, 0
    %10 = vsyncpa [#allocation6], 0
    %s11 = scalar_lea.sflag [#allocation6], 1
    %12 = vsyncpa %s11, 0
    %13 = vsyncpa [#allocation4], 0
    %s14 = scalar_lea.sflag [#allocation4], 1
    %15 = vsyncpa %s14, 0
    loop: start=0, step=1, limit=10
    $region2: #{tpu_custom_call.1} parent=1 // loop_pre_header
      _
    $region3: #{tpu_custom_call.1} parent=1 // loop_header
      %s17 = sphi 0, %s21
      %p18 = scmp.ge.s32.totalorder %s17, 10
      %s24 = sphi 0, %s43
      %s25 = sphi 0, %s39
      %s26 = sphi 0, %s35
      %s27 = sphi 0, %s24
      %s28 = sphi 0, %s25
      %s29 = sphi 0, %s26
      %s30 = sphi 0, %s27
      %s31 = sphi 0, %s28
      %s32 = sphi 0, %s29
      %s50 = sphi 0, %s52
      %s53 = sphi 0, %s50
      %s54 = sphi 0, %s53
      %s70 = sphi 0, %s54
      %s78 = sphi 0, %s80
      %s81 = sphi 0, %s78
      %s82 = sphi 0, %s81
      %s98 = sphi 0, %s82
      %s108 = sphi 0, %s110
      %s111 = sphi 0, %s108
      %s112 = sphi 0, %s111
      %s128 = sphi 0, %s112
    $region4: #{tpu_custom_call.1} parent=1 // loop_header_branch
      %20 = sbr.rel (%p18) target = $region8
    $region5: #{tpu_custom_call.1} parent=1 // loop_body
      %s22 = ssub.s32 %s17, 1
      %s23 = ssub.s32 %s17, 2
      %s33 = sadd.s32 1, %s26
      %p34 = scmp.ge.s32.totalorder %s33, 1
      %s35 = scalar_select %p34, 0, %s33
      %s36 = sadd.s32 1, %s25
      %s37 = scalar_select %p34, %s36, %s25
      %p38 = scmp.ge.s32.totalorder %s37, 4
      %s39 = scalar_select %p38, 0, %s37
      %s40 = sadd.s32 1, %s24
      %s41 = scalar_select %p38, %s40, %s24
      %p42 = scmp.ge.s32.totalorder %s41, 2
      %s43 = scalar_select %p42, 0, %s41
      %s44 = ssub.s32 %s24, %s43
      %s45 = ssub.s32 %s25, %s39
      %s46 = sor.u32 %s44, %s45
      %s47 = ssub.s32 %s26, %s35
      %s48 = sor.u32 %s46, %s47
      %p49 = scmp.eq.s32.totalorder %s48, 0
      %s51 = sadd.s32 %s50, 1
      %s52 = scalar_select %p49, %s50, %s51
      %p55 = pneg %p49
      %p56 = scmp.eq.s32.totalorder %s17, 7
      %p57 = por %p55, %p56
      %p58 = scmp.ne.s32.totalorder %s50, %s53
      %p59 = scmp.eq.s32.totalorder %s17, 0
      %p60 = por %p58, %p59
      %p61 = scmp.ne.s32.totalorder %s50, %s53
      %p62 = scmp.eq.s32.totalorder %s22, 7
      %p63 = por %p61, %p62
      %p64 = scmp.ne.s32.totalorder %s53, %s54
      %p65 = scmp.eq.s32.totalorder %s22, 0
      %p66 = por %p64, %p65
      %p67 = scmp.ne.s32.totalorder %s53, %s54
      %p68 = scmp.eq.s32.totalorder %s23, 7
      %p69 = por %p67, %p68
      %p71 = scmp.ne.s32.totalorder %s54, %s70
      %p72 = scmp.eq.s32.totalorder %s23, 0
      %p73 = por %p71, %p72
      %s74 = ssub.s32 %s24, %s43
      %s75 = ssub.s32 %s26, %s35
      %s76 = sor.u32 %s74, %s75
      %p77 = scmp.eq.s32.totalorder %s76, 0
      %s79 = sadd.s32 %s78, 1
      %s80 = scalar_select %p77, %s78, %s79
      %p83 = pneg %p77
      %p84 = scmp.eq.s32.totalorder %s17, 7
      %p85 = por %p83, %p84
      %p86 = scmp.ne.s32.totalorder %s78, %s81
      %p87 = scmp.eq.s32.totalorder %s17, 0
      %p88 = por %p86, %p87
      %p89 = scmp.ne.s32.totalorder %s78, %s81
      %p90 = scmp.eq.s32.totalorder %s22, 7
      %p91 = por %p89, %p90
      %p92 = scmp.ne.s32.totalorder %s81, %s82
      %p93 = scmp.eq.s32.totalorder %s22, 0
      %p94 = por %p92, %p93
      %p95 = scmp.ne.s32.totalorder %s81, %s82
      %p96 = scmp.eq.s32.totalorder %s23, 7
      %p97 = por %p95, %p96
      %p99 = scmp.ne.s32.totalorder %s82, %s98
      %p100 = scmp.eq.s32.totalorder %s23, 0
      %p101 = por %p99, %p100
      %s102 = ssub.s32 %s24, %s43
      %s103 = ssub.s32 %s25, %s39
      %s104 = sor.u32 %s102, %s103
      %s105 = ssub.s32 %s26, %s35
      %s106 = sor.u32 %s104, %s105
      %p107 = scmp.eq.s32.totalorder %s106, 0
      %s109 = sadd.s32 %s108, 1
      %s110 = scalar_select %p107, %s108, %s109
      %p113 = pneg %p107
      %p114 = scmp.eq.s32.totalorder %s17, 7
      %p115 = por %p113, %p114
      %p116 = scmp.ne.s32.totalorder %s108, %s111
      %p117 = scmp.eq.s32.totalorder %s17, 0
      %p118 = por %p116, %p117
      %p119 = scmp.ne.s32.totalorder %s108, %s111
      %p120 = scmp.eq.s32.totalorder %s22, 7
      %p121 = por %p119, %p120
      %p122 = scmp.ne.s32.totalorder %s111, %s112
      %p123 = scmp.eq.s32.totalorder %s22, 0
      %p124 = por %p122, %p123
      %p125 = scmp.ne.s32.totalorder %s111, %s112
      %p126 = scmp.eq.s32.totalorder %s23, 7
      %p127 = por %p125, %p126
      %p129 = scmp.ne.s32.totalorder %s112, %s128
      %p130 = scmp.eq.s32.totalorder %s23, 0
      %p131 = por %p129, %p130
      %p132 = scmp.le.s32.totalorder 1, %s17
      %p133 = scmp.lt.s32.totalorder %s17, 9
      %p134 = pnand %p132, %p133
      %p135 = pneg %p134
      // Predicated region
      $region9: #{tpu_custom_call.1} parent=5 // pred_check
        _
      $region10: #{tpu_custom_call.1} parent=5 // pred_check_branch
        %137 = sbr.rel (%p134) target = $region12
      $region11: #{tpu_custom_call.1} parent=5 // pred_region
        %s138 = ssub.s32 %s17, 1
      $region12: #{tpu_custom_call.1} parent=5 // pred_fallthru
        _
      %p139 = scmp.lt.s32.totalorder %s17, 8
      // Predicated region
      $region13: #{tpu_custom_call.1} parent=5 // pred_check
        %p140 = pneg %p139
      $region14: #{tpu_custom_call.1} parent=5 // pred_check_branch
        %142 = sbr.rel (%p140) target = $region16
      $region15: #{tpu_custom_call.1} parent=5 // pred_region
        // Predicated region
        $region17: #{tpu_custom_call.1} parent=15 // pred_check
          %p143 = pneg %p60
        $region18: #{tpu_custom_call.1} parent=15 // pred_check_branch
          %145 = sbr.rel (%p143) target = $region20
        $region19: #{tpu_custom_call.1} parent=15 // pred_region
          %s146 = sand.u32 %s50, 1
          %s147 = scalar_lea.sflag [#allocation3], %s146
          %s148 = sand.u32 %s50, 1
          %s149 = smul.addr %s148, 16
          %s150 = scalar_lea.vmem [#allocation2], %s149
          %s151 = smul.u32 2, %s26
          %s153 = ssub.s32 256, 256
          %154 = vsyncadd %s147, %s153
          %s155 = smul.addr %s25, 2
          %s156 = sadd.s32 %s151, %s155
          %s157 = smul.addr %s24, 8
          %s158 = sadd.s32 %s156, %s157
          %s159 = smul.addr %s158, 128
          %s160 = scalar_lea.hbm %s0, %s159
          %s161 = sshll.u32 %s150, 4
          %s162 = int_to_ptr.vmem [resolvable:$true] %s161
          %167 = dma.hbm_to_vmem [thread:$0]  %s160, 256, %s162, %s147, 128, 128, 8
        $region20: #{tpu_custom_call.1} parent=15 // pred_fallthru
          _
        // Predicated region
        $region21: #{tpu_custom_call.1} parent=15 // pred_check
          %p168 = pneg %p88
        $region22: #{tpu_custom_call.1} parent=15 // pred_check_branch
          %170 = sbr.rel (%p168) target = $region24
        $region23: #{tpu_custom_call.1} parent=15 // pred_region
          %s171 = sand.u32 %s78, 1
          %s172 = scalar_lea.sflag [#allocation6], %s171
          %s173 = sand.u32 %s78, 1
          %s174 = smul.addr %s173, 4
          %s175 = scalar_lea.vmem [#allocation5], %s174
          %s176 = smul.u32 2, %s26
          %s178 = ssub.s32 64, 64
          %179 = vsyncadd %s172, %s178
          %s180 = smul.addr %s24, 2
          %s181 = sadd.s32 %s176, %s180
          %s182 = smul.addr %s181, 32
          %s183 = scalar_lea.hbm %s1, %s182
          %s184 = sshll.u32 %s175, 4
          %s185 = int_to_ptr.vmem [resolvable:$true] %s184
          %190 = dma.hbm_to_vmem [thread:$0]  %s183, 64, %s185, %s172, 32, 32, 2
        $region24: #{tpu_custom_call.1} parent=15 // pred_fallthru
          _
      $region16: #{tpu_custom_call.1} parent=5 // pred_fallthru
        _
      %p191 = scmp.le.s32.totalorder 1, %s17
      %p192 = scmp.lt.s32.totalorder %s17, 9
      %p193 = pnand %p191, %p192
      %p194 = pneg %p193
      // Predicated region
      $region25: #{tpu_custom_call.1} parent=5 // pred_check
        _
      $region26: #{tpu_custom_call.1} parent=5 // pred_check_branch
        %196 = sbr.rel (%p193) target = $region28
      $region27: #{tpu_custom_call.1} parent=5 // pred_region
        %s197 = ssub.s32 %s17, 1
        %s198 = sand.u32 %s53, 1
        %s199 = scalar_lea.sflag [#allocation3], %s198
        %s200 = sand.u32 %s53, 1
        %s201 = smul.addr %s200, 16
        %s202 = scalar_lea.vmem [#allocation2], %s201
        // Predicated region
        $region29: #{tpu_custom_call.1} parent=27 // pred_check
          %p203 = pneg %p66
        $region30: #{tpu_custom_call.1} parent=27 // pred_check_branch
          %205 = sbr.rel (%p203) target = $region32
        $region31: #{tpu_custom_call.1} parent=27 // pred_region
          %206 = dma.done %s199, 256
        $region32: #{tpu_custom_call.1} parent=27 // pred_fallthru
          _
        %s207 = sand.u32 %s81, 1
        %s208 = scalar_lea.sflag [#allocation6], %s207
        %s209 = sand.u32 %s81, 1
        %s210 = smul.addr %s209, 4
        %s211 = scalar_lea.vmem [#allocation5], %s210
        // Predicated region
        $region33: #{tpu_custom_call.1} parent=27 // pred_check
          %p212 = pneg %p94
        $region34: #{tpu_custom_call.1} parent=27 // pred_check_branch
          %214 = sbr.rel (%p212) target = $region36
        $region35: #{tpu_custom_call.1} parent=27 // pred_region
          %215 = dma.done %s208, 64
        $region36: #{tpu_custom_call.1} parent=27 // pred_fallthru
          _
        %s216 = sand.u32 %s53, 1
        %s217 = scalar_lea.sflag [#allocation3], %s216
        %s218 = sand.u32 %s53, 1
        %s219 = smul.addr %s218, 16
        %s220 = scalar_lea.vmem [#allocation2], %s219
        %p221 = pneg %p66
        %p222 = pneg %p63
        %s223 = sand.u32 %s81, 1
        %s224 = scalar_lea.sflag [#allocation6], %s223
        %s225 = sand.u32 %s81, 1
        %s226 = smul.addr %s225, 4
        %s227 = scalar_lea.vmem [#allocation5], %s226
        %p228 = pneg %p94
        %p229 = pneg %p91
        %p230 = pneg %p124
        %p231 = pneg %p121
        %s232 = sand.u32 %s111, 1
        %s233 = scalar_lea.sflag [#allocation4], %s232
        %s234 = sand.u32 %s111, 1
        %s235 = smul.addr %s234, 16
        %s236 = scalar_lea.vmem [#allocation7], %s235
        %s237 = smul.u32 2, %s29
        %s238 = smul.u32 2, %s29
        %s239 = smul.u32 2, %s29
        %v242 = vld [vmem:[%s202] sm:$0xff]
        %v243 = vld [vmem:[%s202 + $0x8] sm:$0xff]
        %v244 = vld [vmem:[%s211] sm:$0x3]
        %v245 = vld [vmem:[%s211 + $0x2] sm:$0x3]
        %vm246 = vnez %v244
        %vm247 = vnez %v245
        %v248 = vsub.f32 %v242, 100000.0
        %v249 = vsub.f32 %v243, 100000.0
        %v250 = vsel %vm246, 16843009, 0
        %v251 = vsel %vm247, 16843009, 0
        %v252 = vunpack.c.0.s8 %v250
        %v253 = vunpack.c.0.s8 %v251
        %vm254 = vcmp.ne.s32.totalorder %v252, 0
        %vm255 = vcmp.ne.s32.totalorder %v253, 0
        %v256 = vsel %vm254, %v242, %v248
        %v257 = vsel %vm255, %v243, %v249
        %258 = vmax.xlane.f32.xlu0 %v256
        %v259 = vpop.xlane.xlu0 %258
        %260 = vmax.xlane.f32.xlu0 %v257
        %v261 = vpop.xlane.xlu0 %260
        %v262 = vsub.f32 %v256, %v259
        %v263 = vsub.f32 %v257, %v261
        %v264 = vmul.f32 %v262, 1.442695
        %v265 = vpow.pop %v264
        %v266 = vmul.f32 %v263, 1.442695
        %v267 = vpow.pop %v266
        %268 = vadd.xlane.f32.xlu0 %v265
        %v269 = vpop.xlane.xlu0 %268
        %270 = vadd.xlane.f32.xlu0 %v267
        %v271 = vpop.xlane.xlu0 %270
        %v272 = vrcp.pop %v269
        %v273 = vrcp.pop %v271
        %v274 = vmul.f32 %v265, %v272
        %v275 = vmul.f32 %v267, %v273
        %276 = vst [vmem:[%s236] sm:$0xff] %v274
        %277 = vst [vmem:[%s236 + $0x8] sm:$0xff] %v275
        %s278 = sand.u32 %s111, 1
        %s279 = scalar_lea.sflag [#allocation4], %s278
        %s280 = sand.u32 %s111, 1
        %s281 = smul.addr %s280, 16
        %s282 = scalar_lea.vmem [#allocation7], %s281
        // Predicated region
        $region37: #{tpu_custom_call.1} parent=27 // pred_check
          %p283 = pneg %p121
        $region38: #{tpu_custom_call.1} parent=27 // pred_check_branch
          %285 = sbr.rel (%p283) target = $region40
        $region39: #{tpu_custom_call.1} parent=27 // pred_region
          %s286 = smul.u32 2, %s29
          %s288 = ssub.s32 256, 256
          %289 = vsyncadd %s279, %s288
          %s290 = smul.addr %s28, 2
          %s291 = sadd.s32 %s286, %s290
          %s292 = smul.addr %s27, 8
          %s293 = sadd.s32 %s291, %s292
          %s294 = smul.addr %s293, 128
          %s295 = scalar_lea.hbm %s2, %s294
          %s296 = sshll.u32 %s282, 4
          %s297 = int_to_ptr.vmem [resolvable:$true] %s296
          %302 = dma.vmem_to_hbm [thread:$0]  %s297, 256, %s295, %s279, 128, 128, 8
        $region40: #{tpu_custom_call.1} parent=27 // pred_fallthru
          _
      $region28: #{tpu_custom_call.1} parent=5 // pred_fallthru
        _
      %p303 = scmp.le.s32.totalorder 2, %s17
      // Predicated region
      $region41: #{tpu_custom_call.1} parent=5 // pred_check
        %p304 = pneg %p303
      $region42: #{tpu_custom_call.1} parent=5 // pred_check_branch
        %306 = sbr.rel (%p304) target = $region44
      $region43: #{tpu_custom_call.1} parent=5 // pred_region
        %s307 = ssub.s32 %s17, 2
        // Predicated region
        $region45: #{tpu_custom_call.1} parent=43 // pred_check
          %p308 = pneg %p127
        $region46: #{tpu_custom_call.1} parent=43 // pred_check_branch
          %310 = sbr.rel (%p308) target = $region48
        $region47: #{tpu_custom_call.1} parent=43 // pred_region
          %s311 = sand.u32 %s112, 1
          %s312 = scalar_lea.sflag [#allocation4], %s311
          %s313 = sand.u32 %s112, 1
          %s314 = smul.addr %s313, 16
          %s315 = scalar_lea.vmem [#allocation7], %s314
          %316 = dma.done %s312, 256
        $region48: #{tpu_custom_call.1} parent=43 // pred_fallthru
          _
      $region44: #{tpu_custom_call.1} parent=5 // pred_fallthru
        _
    $region6: #{tpu_custom_call.1} parent=1 // loop_footer
      %s21 = sadd.s32 1, %s17
    $region7: #{tpu_custom_call.1} parent=1 // loop_footer_branch
      %16 = sbr.rel target = $region3
    $region8: #{tpu_custom_call.1} parent=1 // loop_exit
      _
    %317 = vsyncpa [#allocation3], 1
    %s318 = scalar_lea.sflag [#allocation3], 1
    %319 = vsyncpa %s318, 1
    %320 = vsyncpa [#allocation6], 1
    %s321 = scalar_lea.sflag [#allocation6], 1
    %322 = vsyncpa %s321, 1
    %323 = vsyncpa [#allocation4], 1
    %s324 = scalar_lea.sflag [#allocation4], 1
    %325 = vsyncpa %s324, 1

</llo_original>
